<compile_context>
chip_gen: v5e
topology: v5e:2x2
jax: 0.10.0
libtpu: 0.0.40
codegen_flags: <defaults>
</compile_context>

<pallas_src>
import jax
import jax.numpy as jnp
from jax import lax
from jax.experimental import pallas as pl
from jax.experimental.pallas import tpu as pltpu

OBS_SIZE = 4       # env.parameters.size
HIDDEN_SIZE = 32
N_ACTIONS = 4

_LANE = 128        # lane width; batch tiles are multiples of this
_MAX_TB = 8192     # batch-tile cap (sweep-chosen); ~3 MiB VMEM, fits every gen
_SMALL_BATCH = 1024  # below this, a plain XLA fusion beats a pallas_call


def _mlp_kernel(x_ref, w1_ref, b1_ref, w2_ref, b2_ref, w3_ref, b3_ref, o_ref):
    # x_ref is batch-major (TB, OBS).  Contract the last dim of both operands
    # (w1 . x^T) so activations are feature-major (features on sublanes,
    # batch on the 128 lanes): dense VPU work and a lane-dense output store.
    dn = (((1,), (1,)), ((), ()))
    h1 = lax.dot_general(w1_ref[...], x_ref[...], dn,
                         preferred_element_type=jnp.float32) + b1_ref[...]
    h1 = jnp.maximum(h1, 0.0)                                        # ReLU
    h2 = jnp.dot(w2_ref[...], h1,
                 preferred_element_type=jnp.float32) + b2_ref[...]
    h2 = jnp.maximum(h2, 0.0)                                        # ReLU
    h3 = jnp.dot(w3_ref[...], h2,
                 preferred_element_type=jnp.float32) + b3_ref[...]
    o_ref[...] = jnp.tanh(h3) * 0.2                                  # tanh(x) / 5


def _choose_tb(batch):
    """Batch tile: multiple of 128, capped, and >=2 grid steps when possible."""
    b_pad = pl.cdiv(batch, _LANE) * _LANE
    tb = min(_MAX_TB, b_pad)
    # v7x has two TensorCores; give the "parallel" grid axis >= 2 steps to
    # shard whenever the batch allows it (no-op on v5e/v6e's single TC).
    if b_pad // tb < 2 and b_pad >= 2 * _LANE:
        tb = pl.cdiv(pl.cdiv(b_pad, 2), _LANE) * _LANE
    return tb


def net_forward_pallas(x, params):
    """x: (B, OBS_SIZE) float32 -> (B, N_ACTIONS) float32 via the Pallas kernel."""
    w1, b1, w2, b2, w3, b3 = params
    B = x.shape[0]

    TB = _choose_tb(B)
    grid = pl.cdiv(B, TB)
    B_out = grid * TB  # lane-dense padded output width; padded cols sliced off

    const = lambda shape: pl.BlockSpec(shape, lambda i: (0, 0))

    out_t = pl.pallas_call(
        _mlp_kernel,
        out_shape=jax.ShapeDtypeStruct((N_ACTIONS, B_out), jnp.float32),
        grid=(grid,),
        in_specs=[
            # x batch-major, tiled along batch; last block may read OOB rows,
            # those columns never mix with valid ones and are sliced off.
            pl.BlockSpec((TB, OBS_SIZE), lambda i: (i, 0)),
            const((HIDDEN_SIZE, OBS_SIZE)),                          # w1 (resident)
            const((HIDDEN_SIZE, 1)),                                 # b1
            const((HIDDEN_SIZE, HIDDEN_SIZE)),                       # w2
            const((HIDDEN_SIZE, 1)),                                 # b2
            const((N_ACTIONS, HIDDEN_SIZE)),                         # w3
            const((N_ACTIONS, 1)),                                   # b3
        ],
        out_specs=pl.BlockSpec((N_ACTIONS, TB), lambda i: (0, i)),
        compiler_params=pltpu.CompilerParams(
            dimension_semantics=("parallel",)),                      # 2 TCs on v7x
    )(x, w1, b1, w2, b2, w3, b3)

    return out_t[:, :B].T                                            # (B, N_ACTIONS)


def net_forward(x, params):
    """Dispatcher: tiny RL-style batches use the fused-XLA path (launch/pad
    overhead of a pallas_call loses at these sizes); large batches use Pallas."""
    if x.shape[0] < _SMALL_BATCH:
        return net_forward_ref(x, params)
    return net_forward_pallas(x, params)


def init_params(key):
    """PyTorch nn.Linear-style init (U[-1/sqrt(fan_in), 1/sqrt(fan_in)]).

    Weights stored PyTorch-style as (out_features, in_features); biases as
    (out_features, 1) for lane-broadcast inside the kernel.
    """
    def linear(key, fan_in, fan_out):
        kw, kb = jax.random.split(key)
        bound = 1.0 / jnp.sqrt(fan_in)
        w = jax.random.uniform(kw, (fan_out, fan_in), jnp.float32, -bound, bound)
        b = jax.random.uniform(kb, (fan_out, 1), jnp.float32, -bound, bound)
        return w, b

    k1, k2, k3 = jax.random.split(key, 3)
    w1, b1 = linear(k1, OBS_SIZE, HIDDEN_SIZE)
    w2, b2 = linear(k2, HIDDEN_SIZE, HIDDEN_SIZE)
    w3, b3 = linear(k3, HIDDEN_SIZE, N_ACTIONS)
    return (w1, b1, w2, b2, w3, b3)


def net_forward_ref(x, params):
    """Pure-JAX reference (batch-major, PyTorch orientation)."""
    w1, b1, w2, b2, w3, b3 = params
    h = jnp.maximum(x @ w1.T + b1.T, 0.0)
    h = jnp.maximum(h @ w2.T + b2.T, 0.0)
    return jnp.tanh(h @ w3.T + b3.T) / 5.0


if __name__ == "__main__":
    key = jax.random.PRNGKey(0)
    kp, kx1, kx2 = jax.random.split(key, 3)

    params = init_params(kp)

    # Tiny batch (env.parameters has 4 entries) -- exercise the Pallas path
    # explicitly and the dispatcher's fast path.
    x_small = jax.random.uniform(kx1, (8, OBS_SIZE), jnp.float32, 0.001, 0.2)
    out_small = jax.block_until_ready(net_forward_pallas(x_small, params))
    ref_small = net_forward_ref(x_small, params)
    assert out_small.shape == (8, N_ACTIONS)
    assert jnp.allclose(out_small, ref_small, atol=1e-5, rtol=1e-5)
    assert jnp.allclose(net_forward(x_small, params), ref_small, atol=1e-5, rtol=1e-5)

    # Non-multiple-of-tile batch -- exercises a 2-step grid and the padded
    # (OOB-read) last block.
    x_med = jax.random.uniform(kx2, (384, OBS_SIZE), jnp.float32, 0.001, 0.2)
    out_med = jax.block_until_ready(net_forward_pallas(x_med, params))
    ref_med = net_forward_ref(x_med, params)
    assert out_med.shape == (384, N_ACTIONS)
    assert jnp.allclose(out_med, ref_med, atol=1e-5, rtol=1e-5)

    print("KERNEL_OK")
</pallas_src>

<mosaic_0001>
module attributes {stable_mosaic.version = 11 : i64} {
  func.func @_mlp_kernel(%arg0: i32, %arg1: memref<128x4xf32, #tpu.memory_space<vmem>>, %arg2: memref<32x4xf32, #tpu.memory_space<vmem>>, %arg3: memref<32x1xf32, #tpu.memory_space<vmem>>, %arg4: memref<32x32xf32, #tpu.memory_space<vmem>>, %arg5: memref<32x1xf32, #tpu.memory_space<vmem>>, %arg6: memref<4x32xf32, #tpu.memory_space<vmem>>, %arg7: memref<4x1xf32, #tpu.memory_space<vmem>>, %arg8: memref<4x128xf32, #tpu.memory_space<vmem>>) attributes {dimension_semantics = [#tpu.dimension_semantics<parallel>], iteration_bounds = array<i64: 1>, scalar_prefetch = 0 : i64, scratch_operands = 0 : i64, tpu.core_type = #tpu.core_type<tc>, window_params = [{transform_indices = @transform_0, window_bounds = array<i64: 128, 4>}, {pipeline_mode = #tpu.pipeline_mode<synchronous>, transform_indices = @transform_1, window_bounds = array<i64: 32, 4>}, {pipeline_mode = #tpu.pipeline_mode<synchronous>, transform_indices = @transform_2, window_bounds = array<i64: 32, 1>}, {pipeline_mode = #tpu.pipeline_mode<synchronous>, transform_indices = @transform_3, window_bounds = array<i64: 32, 32>}, {pipeline_mode = #tpu.pipeline_mode<synchronous>, transform_indices = @transform_4, window_bounds = array<i64: 32, 1>}, {pipeline_mode = #tpu.pipeline_mode<synchronous>, transform_indices = @transform_5, window_bounds = array<i64: 4, 32>}, {pipeline_mode = #tpu.pipeline_mode<synchronous>, transform_indices = @transform_6, window_bounds = array<i64: 4, 1>}, {transform_indices = @transform_7, window_bounds = array<i64: 4, 128>}]} {
    %c0 = arith.constant 0 : index
    %c0_0 = arith.constant 0 : index
    %0 = vector.load %arg2[%c0, %c0_0] : memref<32x4xf32, #tpu.memory_space<vmem>>, vector<32x4xf32>
    %c0_1 = arith.constant 0 : index
    %c0_2 = arith.constant 0 : index
    %1 = vector.load %arg1[%c0_1, %c0_2] : memref<128x4xf32, #tpu.memory_space<vmem>>, vector<128x4xf32>
    %cst = arith.constant dense<0.000000e+00> : vector<32x128xf32>
    %2 = tpu.matmul %0, %1, %cst {dimension_numbers = #tpu.dot_dimension_numbers<[1], [1], [0], [0], [0, 0, 1, 0], [], []>} : vector<32x4xf32>, vector<128x4xf32>, vector<32x128xf32> -> vector<32x128xf32>
    %c0_3 = arith.constant 0 : index
    %c0_4 = arith.constant 0 : index
    %3 = vector.load %arg3[%c0_3, %c0_4] : memref<32x1xf32, #tpu.memory_space<vmem>>, vector<32x1xf32>
    %4 = vector.broadcast %3 : vector<32x1xf32> to vector<32x128xf32>
    %5 = arith.addf %2, %4 : vector<32x128xf32>
    %cst_5 = arith.constant 0.000000e+00 : f32
    %6 = vector.broadcast %cst_5 : f32 to vector<32x128xf32>
    %7 = arith.maximumf %5, %6 : vector<32x128xf32>
    %c0_6 = arith.constant 0 : index
    %c0_7 = arith.constant 0 : index
    %8 = vector.load %arg4[%c0_6, %c0_7] : memref<32x32xf32, #tpu.memory_space<vmem>>, vector<32x32xf32>
    %cst_8 = arith.constant dense<0.000000e+00> : vector<32x128xf32>
    %9 = tpu.matmul %8, %7, %cst_8 {dimension_numbers = #tpu.dot_dimension_numbers<[1], [0], [0], [1], [0, 0, 1, 1], [], []>} : vector<32x32xf32>, vector<32x128xf32>, vector<32x128xf32> -> vector<32x128xf32>
    %c0_9 = arith.constant 0 : index
    %c0_10 = arith.constant 0 : index
    %10 = vector.load %arg5[%c0_9, %c0_10] : memref<32x1xf32, #tpu.memory_space<vmem>>, vector<32x1xf32>
    %11 = vector.broadcast %10 : vector<32x1xf32> to vector<32x128xf32>
    %12 = arith.addf %9, %11 : vector<32x128xf32>
    %cst_11 = arith.constant 0.000000e+00 : f32
    %13 = vector.broadcast %cst_11 : f32 to vector<32x128xf32>
    %14 = arith.maximumf %12, %13 : vector<32x128xf32>
    %c0_12 = arith.constant 0 : index
    %c0_13 = arith.constant 0 : index
    %15 = vector.load %arg6[%c0_12, %c0_13] : memref<4x32xf32, #tpu.memory_space<vmem>>, vector<4x32xf32>
    %cst_14 = arith.constant dense<0.000000e+00> : vector<4x128xf32>
    %16 = tpu.matmul %15, %14, %cst_14 {dimension_numbers = #tpu.dot_dimension_numbers<[1], [0], [0], [1], [0, 0, 1, 1], [], []>} : vector<4x32xf32>, vector<32x128xf32>, vector<4x128xf32> -> vector<4x128xf32>
    %c0_15 = arith.constant 0 : index
    %c0_16 = arith.constant 0 : index
    %17 = vector.load %arg7[%c0_15, %c0_16] : memref<4x1xf32, #tpu.memory_space<vmem>>, vector<4x1xf32>
    %18 = vector.broadcast %17 : vector<4x1xf32> to vector<4x128xf32>
    %19 = arith.addf %16, %18 : vector<4x128xf32>
    %20 = math.tanh %19 : vector<4x128xf32>
    %cst_17 = arith.constant 2.000000e-01 : f32
    %21 = vector.broadcast %cst_17 : f32 to vector<4x128xf32>
    %22 = arith.mulf %20, %21 : vector<4x128xf32>
    %c0_18 = arith.constant 0 : index
    %c0_19 = arith.constant 0 : index
    %23 = vector.load %arg8[%c0_18, %c0_19] : memref<4x128xf32, #tpu.memory_space<vmem>>, vector<4x128xf32>
    tpu.vector_store %arg8[%c0_18, %c0_19], %22 {strides = array<i32>} : memref<4x128xf32, #tpu.memory_space<vmem>>, vector<4x128xf32>,
    return
  }
  func.func @transform_0(%arg0: i32) -> (i32, i32) {
    %c0_i32 = arith.constant 0 : i32
    %c0_i32_0 = arith.constant 0 : i32
    return %arg0, %c0_i32 : i32, i32
  }
  func.func @transform_1(%arg0: i32) -> (i32, i32) {
    %c0_i32 = arith.constant 0 : i32
    %c0_i32_0 = arith.constant 0 : i32
    %c0_i32_1 = arith.constant 0 : i32
    return %c0_i32, %c0_i32_0 : i32, i32
  }
  func.func @transform_2(%arg0: i32) -> (i32, i32) {
    %c0_i32 = arith.constant 0 : i32
    %c0_i32_0 = arith.constant 0 : i32
    %c0_i32_1 = arith.constant 0 : i32
    return %c0_i32, %c0_i32_0 : i32, i32
  }
  func.func @transform_3(%arg0: i32) -> (i32, i32) {
    %c0_i32 = arith.constant 0 : i32
    %c0_i32_0 = arith.constant 0 : i32
    %c0_i32_1 = arith.constant 0 : i32
    return %c0_i32, %c0_i32_0 : i32, i32
  }
  func.func @transform_4(%arg0: i32) -> (i32, i32) {
    %c0_i32 = arith.constant 0 : i32
    %c0_i32_0 = arith.constant 0 : i32
    %c0_i32_1 = arith.constant 0 : i32
    return %c0_i32, %c0_i32_0 : i32, i32
  }
  func.func @transform_5(%arg0: i32) -> (i32, i32) {
    %c0_i32 = arith.constant 0 : i32
    %c0_i32_0 = arith.constant 0 : i32
    %c0_i32_1 = arith.constant 0 : i32
    return %c0_i32, %c0_i32_0 : i32, i32
  }
  func.func @transform_6(%arg0: i32) -> (i32, i32) {
    %c0_i32 = arith.constant 0 : i32
    %c0_i32_0 = arith.constant 0 : i32
    %c0_i32_1 = arith.constant 0 : i32
    return %c0_i32, %c0_i32_0 : i32, i32
  }
  func.func @transform_7(%arg0: i32) -> (i32, i32) {
    %c0_i32 = arith.constant 0 : i32
    %c0_i32_0 = arith.constant 0 : i32
    return %c0_i32, %arg0 : i32, i32
  }
}

</mosaic_0001>

<llo_original>
// kernel: tpu_custom_call.1
$region0: #{tpu_custom_call.1}
  #allocation0 [shape = 'u32[]', space=smem, size = 0x4, offset = 0x4, fixed_abs, tag = 'smem constant byte address 0x4 - core index']
  #allocation1 [shape = 'u32[72,128]{1,0:T(1,128)}', space=vmem, size = 0x9000, scoped, tag = 'internal scratch']
  %s0 = inlined_call_operand.vmem [shape: f32[8,4], index: 0, kind: input, shape index: {}]
  %s1 = inlined_call_operand.vmem [shape: f32[32,4], index: 1, kind: input, shape index: {}]
  %s2 = inlined_call_operand.vmem [shape: f32[32,1], index: 2, kind: input, shape index: {}]
  %s3 = inlined_call_operand.vmem [shape: f32[32,32], index: 3, kind: input, shape index: {}]
  %s4 = inlined_call_operand.vmem [shape: f32[32,1], index: 4, kind: input, shape index: {}]
  %s5 = inlined_call_operand.vmem [shape: f32[4,32], index: 5, kind: input, shape index: {}]
  %s6 = inlined_call_operand.vmem [shape: f32[4,1], index: 6, kind: input, shape index: {}]
  %s7 = inlined_call_operand.hbm [shape: f32[4,128], index: 7, kind: output, shape index: {}]
  %s8 = sld [smem:[#allocation0]]
  $region38: #{tpu_custom_call.1} parent=0
    _
  %s10 = ssub.s32 1, %s8
  %s11 = scalar_select 0, %s10, %s8
  $region1: #{tpu_custom_call.1} parent=0
    #allocation2 [shape = 'u8[2048]{0}', space=vmem, size = 0x800, scoped, tag = 'output window, operand 0, single buffered']
    #allocation3 [shape = 's32[1]{0}', space=sflag, size = 0x4, scoped, tag = 'scoped memory for tpu_custom_call.1']
    %12 = vsyncpa [#allocation3], 0
    // Predicated region
    $region2: #{tpu_custom_call.1} parent=1 // pred_check
      _
    $region3: #{tpu_custom_call.1} parent=1 // pred_check_branch
      %14 = sbr.rel (0) target = $region5
    $region4: #{tpu_custom_call.1} parent=1 // pred_region
      _
    $region5: #{tpu_custom_call.1} parent=1 // pred_fallthru
      _
    // Predicated region
    $region6: #{tpu_custom_call.1} parent=1 // pred_check
      _
    $region7: #{tpu_custom_call.1} parent=1 // pred_check_branch
      %16 = sbr.rel (0) target = $region9
    $region8: #{tpu_custom_call.1} parent=1 // pred_region
      _
    $region9: #{tpu_custom_call.1} parent=1 // pred_fallthru
      _
    // Predicated region
    $region10: #{tpu_custom_call.1} parent=1 // pred_check
      _
    $region11: #{tpu_custom_call.1} parent=1 // pred_check_branch
      %18 = sbr.rel (0) target = $region13
    $region12: #{tpu_custom_call.1} parent=1 // pred_region
      _
    $region13: #{tpu_custom_call.1} parent=1 // pred_fallthru
      _
    // Predicated region
    $region14: #{tpu_custom_call.1} parent=1 // pred_check
      _
    $region15: #{tpu_custom_call.1} parent=1 // pred_check_branch
      %20 = sbr.rel (0) target = $region17
    $region16: #{tpu_custom_call.1} parent=1 // pred_region
      _
    $region17: #{tpu_custom_call.1} parent=1 // pred_fallthru
      _
    // Predicated region
    $region18: #{tpu_custom_call.1} parent=1 // pred_check
      _
    $region19: #{tpu_custom_call.1} parent=1 // pred_check_branch
      %22 = sbr.rel (0) target = $region21
    $region20: #{tpu_custom_call.1} parent=1 // pred_region
      _
    $region21: #{tpu_custom_call.1} parent=1 // pred_fallthru
      _
    // Predicated region
    $region22: #{tpu_custom_call.1} parent=1 // pred_check
      _
    $region23: #{tpu_custom_call.1} parent=1 // pred_check_branch
      %24 = sbr.rel (0) target = $region25
    $region24: #{tpu_custom_call.1} parent=1 // pred_region
      _
    $region25: #{tpu_custom_call.1} parent=1 // pred_fallthru
      _
    // Predicated region
    $region26: #{tpu_custom_call.1} parent=1 // pred_check
      _
    $region27: #{tpu_custom_call.1} parent=1 // pred_check_branch
      %26 = sbr.rel (0) target = $region29
    $region28: #{tpu_custom_call.1} parent=1 // pred_region
      _
    $region29: #{tpu_custom_call.1} parent=1 // pred_fallthru
      _
    %v27 = vld [vmem:[%s1] sm:$0xff]
    %v28 = vld [vmem:[%s1 + $0x8] sm:$0xff]
    %v29 = vld [vmem:[%s1 + $0x10] sm:$0xff]
    %v30 = vld [vmem:[%s1 + $0x18] sm:$0xff]
    %v31 = vld [vmem:[%s0] sm:$0xff]
    %v32 = vld [vmem:[%s0 + $0x8] sm:$0xff]
    %v33 = vld [vmem:[%s0 + $0x10] sm:$0xff]
    %v34 = vld [vmem:[%s0 + $0x18] sm:$0xff]
    %v35 = vld [vmem:[%s0 + $0x20] sm:$0xff]
    %v36 = vld [vmem:[%s0 + $0x28] sm:$0xff]
    %v37 = vld [vmem:[%s0 + $0x30] sm:$0xff]
    %v38 = vld [vmem:[%s0 + $0x38] sm:$0xff]
    %v39 = vld [vmem:[%s0 + $0x40] sm:$0xff]
    %v40 = vld [vmem:[%s0 + $0x48] sm:$0xff]
    %v41 = vld [vmem:[%s0 + $0x50] sm:$0xff]
    %v42 = vld [vmem:[%s0 + $0x58] sm:$0xff]
    %v43 = vld [vmem:[%s0 + $0x60] sm:$0xff]
    %v44 = vld [vmem:[%s0 + $0x68] sm:$0xff]
    %v45 = vld [vmem:[%s0 + $0x70] sm:$0xff]
    %v46 = vld [vmem:[%s0 + $0x78] sm:$0xff]
    %v47 = vld [vmem:[%s2] sm:$0xff]
    %v48 = vld [vmem:[%s2 + $0x8] sm:$0xff]
    %v49 = vld [vmem:[%s2 + $0x10] sm:$0xff]
    %v50 = vld [vmem:[%s2 + $0x18] sm:$0xff]
    %52 = vset.pattern.permute.xlu0 0
    %53 = vperm.xlu0 %52, %v47
    %v54 = vpop.permute.xlu0 %53
    %57 = vset.pattern.permute.xlu0 0
    %58 = vperm.xlu0 %57, %v48
    %v59 = vpop.permute.xlu0 %58
    %62 = vset.pattern.permute.xlu0 0
    %63 = vperm.xlu0 %62, %v49
    %v64 = vpop.permute.xlu0 %63
    %67 = vset.pattern.permute.xlu0 0
    %68 = vperm.xlu0 %67, %v50
    %v69 = vpop.permute.xlu0 %68
    %vm71 = vcmask 31744
    %v73 = vsel %vm71, %v27, 0
    %v76 = vsel %vm71, %v28, 0
    %v79 = vsel %vm71, %v29, 0
    %v82 = vsel %vm71, %v30, 0
    %v85 = vsel %vm71, %v31, 0
    %v88 = vsel %vm71, %v32, 0
    %v91 = vsel %vm71, %v33, 0
    %v94 = vsel %vm71, %v34, 0
    %v97 = vsel %vm71, %v35, 0
    %v100 = vsel %vm71, %v36, 0
    %v103 = vsel %vm71, %v37, 0
    %v106 = vsel %vm71, %v38, 0
    %v109 = vsel %vm71, %v39, 0
    %v112 = vsel %vm71, %v40, 0
    %v115 = vsel %vm71, %v41, 0
    %v118 = vsel %vm71, %v42, 0
    %v121 = vsel %vm71, %v43, 0
    %v124 = vsel %vm71, %v44, 0
    %v127 = vsel %vm71, %v45, 0
    %v130 = vsel %vm71, %v46, 0
    %132 = vmatpush.xpose.msra.mxu0 %v130
    %133 = vmatpush.xpose.msra.mxu0 %v127
    %134 = vmatpush.xpose.msra.mxu0 %v124
    %135 = vmatpush.xpose.msra.mxu0 %v121
    %136 = vmatpush.xpose.msra.mxu0 %v118
    %137 = vmatpush.xpose.msra.mxu0 %v115
    %138 = vmatpush.xpose.msra.mxu0 %v112
    %139 = vmatpush.xpose.msra.mxu0 %v109
    %140 = vmatpush.xpose.msra.mxu0 %v106
    %141 = vmatpush.xpose.msra.mxu0 %v103
    %142 = vmatpush.xpose.msra.mxu0 %v100
    %143 = vmatpush.xpose.msra.mxu0 %v97
    %144 = vmatpush.xpose.msra.mxu0 %v94
    %145 = vmatpush.xpose.msra.mxu0 %v91
    %146 = vmatpush.xpose.msra.mxu0 %v88
    %147 = vmatpush.xpose.msra.mxu0 %v85
    %148 = vmatmul.f32.gmra.mxu0 %v73
    %v149 = vpop.f32.mrf.mxu0
    %v150 = vadd.f32 %v54, %v149
    %151 = vmatmul.f32.gmra.mxu0 %v76
    %v152 = vpop.f32.mrf.mxu0
    %v153 = vadd.f32 %v59, %v152
    %154 = vmatmul.f32.gmra.mxu0 %v79
    %v155 = vpop.f32.mrf.mxu0
    %v156 = vadd.f32 %v64, %v155
    %157 = vmatmul.f32.gmra.mxu0 %v82
    %v158 = vpop.f32.mrf.mxu0
    %v159 = vadd.f32 %v69, %v158
    %160 = vdwg.mxu0
    %v161 = vmax.f32 %v150, 0.0
    %v162 = vmax.f32 %v153, 0.0
    %v163 = vmax.f32 %v156, 0.0
    %v164 = vmax.f32 %v159, 0.0
    %v165 = vld [vmem:[%s3] sm:$0xff]
    %v166 = vld [vmem:[%s3 + $0x8] sm:$0xff]
    %v167 = vld [vmem:[%s3 + $0x10] sm:$0xff]
    %v168 = vld [vmem:[%s3 + $0x18] sm:$0xff]
    %v169 = vld [vmem:[%s4] sm:$0xff]
    %v170 = vld [vmem:[%s4 + $0x8] sm:$0xff]
    %v171 = vld [vmem:[%s4 + $0x10] sm:$0xff]
    %v172 = vld [vmem:[%s4 + $0x18] sm:$0xff]
    %174 = vset.pattern.permute.xlu0 0
    %175 = vperm.xlu0 %174, %v169
    %v176 = vpop.permute.xlu0 %175
    %179 = vset.pattern.permute.xlu0 0
    %180 = vperm.xlu0 %179, %v170
    %v181 = vpop.permute.xlu0 %180
    %184 = vset.pattern.permute.xlu0 0
    %185 = vperm.xlu0 %184, %v171
    %v186 = vpop.permute.xlu0 %185
    %189 = vset.pattern.permute.xlu0 0
    %190 = vperm.xlu0 %189, %v172
    %v191 = vpop.permute.xlu0 %190
    %vm193 = vcmask 261120
    %v195 = vsel %vm193, %v165, 0
    %v198 = vsel %vm193, %v166, 0
    %v201 = vsel %vm193, %v167, 0
    %v204 = vsel %vm193, %v168, 0
    %206 = vmatpush.msra.mxu0 0.0
    %207 = vmatpush.msra.mxu0 0.0
    %208 = vmatpush.msra.mxu0 0.0
    %209 = vmatpush.msra.mxu0 0.0
    %210 = vmatpush.msra.mxu0 0.0
    %211 = vmatpush.msra.mxu0 0.0
    %212 = vmatpush.msra.mxu0 0.0
    %213 = vmatpush.msra.mxu0 0.0
    %214 = vmatpush.msra.mxu0 0.0
    %215 = vmatpush.msra.mxu0 0.0
    %216 = vmatpush.msra.mxu0 0.0
    %217 = vmatpush.msra.mxu0 0.0
    %218 = vmatpush.msra.mxu0 %v164
    %219 = vmatpush.msra.mxu0 %v163
    %220 = vmatpush.msra.mxu0 %v162
    %221 = vmatpush.msra.mxu0 %v161
    %222 = vmatmul.f32.gmra.mxu0 %v195
    %v223 = vpop.f32.mrf.mxu0
    %v224 = vadd.f32 %v176, %v223
    %225 = vmatmul.f32.gmra.mxu0 %v198
    %v226 = vpop.f32.mrf.mxu0
    %v227 = vadd.f32 %v181, %v226
    %228 = vmatmul.f32.gmra.mxu0 %v201
    %v229 = vpop.f32.mrf.mxu0
    %v230 = vadd.f32 %v186, %v229
    %231 = vmatmul.f32.gmra.mxu0 %v204
    %v232 = vpop.f32.mrf.mxu0
    %v233 = vadd.f32 %v191, %v232
    %234 = vdwg.mxu0
    %v235 = vmax.f32 %v224, 0.0
    %v236 = vmax.f32 %v227, 0.0
    %v237 = vmax.f32 %v230, 0.0
    %v238 = vmax.f32 %v233, 0.0
    %v239 = vld [vmem:[%s5] sm:$0xf]
    %v240 = vld [vmem:[%s6] sm:$0xf]
    %242 = vset.pattern.permute.xlu0 0
    %243 = vperm.xlu0 %242, %v240
    %v244 = vpop.permute.xlu0 %243
    %v247 = vsel %vm193, %v239, 0
    %249 = vmatpush.msra.mxu0 0.0
    %250 = vmatpush.msra.mxu0 0.0
    %251 = vmatpush.msra.mxu0 0.0
    %252 = vmatpush.msra.mxu0 0.0
    %253 = vmatpush.msra.mxu0 0.0
    %254 = vmatpush.msra.mxu0 0.0
    %255 = vmatpush.msra.mxu0 0.0
    %256 = vmatpush.msra.mxu0 0.0
    %257 = vmatpush.msra.mxu0 0.0
    %258 = vmatpush.msra.mxu0 0.0
    %259 = vmatpush.msra.mxu0 0.0
    %260 = vmatpush.msra.mxu0 0.0
    %261 = vmatpush.msra.mxu0 %v238
    %262 = vmatpush.msra.mxu0 %v237
    %263 = vmatpush.msra.mxu0 %v236
    %264 = vmatpush.msra.mxu0 %v235
    %265 = vmatmul.f32.gmra.mxu0 %v247
    %v266 = vpop.f32.mrf.mxu0
    %v267 = vadd.f32 %v244, %v266
    %268 = vdwg.mxu0
    %v269 = vtanh.pop %v267
    %v270 = vmul.f32 %v269, 0.2
    %271 = vst [vmem:[#allocation2] sm:$0xf] %v270
    // Predicated region
    $region30: #{tpu_custom_call.1} parent=1 // pred_check
      _
    $region31: #{tpu_custom_call.1} parent=1 // pred_check_branch
      %273 = sbr.rel (0) target = $region33
    $region32: #{tpu_custom_call.1} parent=1 // pred_region
      %275 = vsyncadd [#allocation3], 0
      %s277 = sshll.u32 [#allocation2], 4
      %s278 = int_to_ptr.vmem [resolvable:$true] %s277
      %s279 = sshll.u32 %s7, 4
      %s280 = int_to_ptr.hbm [resolvable:$true] %s279
      %282 = dma.vmem_to_hbm [thread:$0]  %s278, 64, %s280, [#allocation3]
    $region33: #{tpu_custom_call.1} parent=1 // pred_fallthru
      _
    // Predicated region
    $region34: #{tpu_custom_call.1} parent=1 // pred_check
      _
    $region35: #{tpu_custom_call.1} parent=1 // pred_check_branch
      %284 = sbr.rel (0) target = $region37
    $region36: #{tpu_custom_call.1} parent=1 // pred_region
      %286 = dma.done [#allocation3], 64
    $region37: #{tpu_custom_call.1} parent=1 // pred_fallthru
      _
    %287 = vsyncpa [#allocation3], 1

</llo_original>
